<compile_context>
chip_gen: v7x
topology: tpu7x:2x2x1
jax: 0.10.0
libtpu: 0.0.40
codegen_flags: <defaults>
</compile_context>

<pallas_src>
import functools

import jax
import jax.numpy as jnp
from jax import lax
from jax.experimental import pallas as pl
from jax.experimental.pallas import tpu as pltpu


# Tile caps: one tile per dim whenever the padded dim fits, else this cap.
_TM_MAX = 512     # batch tile
_TN_MAX = 512     # output-feature tile (lane dim of the output)
_TK_MAX = 2048    # reduction tile


def _round_up(v, m):
    return ((v + m - 1) // m) * m


def _plan_dim(n, tile_cap, align):
    """Pad `n` to `align`; use one tile if it fits, else pad to `tile_cap`."""
    n_pad = _round_up(n, align)
    if n_pad <= tile_cap:
        return n_pad, n_pad
    return _round_up(n, tile_cap), tile_cap


def _linear_kernel_single_k(x_ref, w_ref, b_ref, out_ref):
    """One (tm, tn) output tile; the whole K dim is resident in one tile."""
    out_ref[...] = (
        lax.dot_general(x_ref[...], w_ref[...],
                        dimension_numbers=(((1,), (1,)), ((), ())),
                        preferred_element_type=jnp.float32)
        + b_ref[...]).astype(out_ref.dtype)


def _linear_kernel_multi_k(x_ref, w_ref, b_ref, out_ref, acc_ref):
    """One (tm, tn) output tile, accumulating over the K grid axis.

    x_ref:   (tm, tk) VMEM  -- raw activations (f32 or bf16)
    w_ref:   (tn, tk) VMEM  -- raw weights (f32 or bf16); K contracted directly
    b_ref:   (1, tn)  VMEM  -- bias row (f32)
    out_ref: (tm, tn) VMEM  -- layer output tile (f32)
    acc_ref: (tm, tn) f32 VMEM scratch persisting across the K axis
    """
    k = pl.program_id(2)

    @pl.when(k == 0)
    def _init():
        acc_ref[...] = jnp.zeros_like(acc_ref)

    acc_ref[...] += lax.dot_general(
        x_ref[...], w_ref[...],
        dimension_numbers=(((1,), (1,)), ((), ())),
        preferred_element_type=jnp.float32)

    @pl.when(k == pl.num_programs(2) - 1)
    def _finalize():
        out_ref[...] = (acc_ref[...] + b_ref[...]).astype(out_ref.dtype)


def prepare_memristive_weights(weights, bias, *, use_bf16_mxu=False,
                               tn_max=_TN_MAX, tk_max=_TK_MAX):
    """One-time weight prep: pad to the tile plan and (optionally) cast to bf16.

    Call once at model init for fixed weights; doing the padding / casting per
    call would cost a full extra HBM pass over the (M, K) weight matrix.
    """
    weights = jnp.asarray(weights, jnp.float32)
    bias = jnp.asarray(bias, jnp.float32)
    M, K = weights.shape

    M_pad, tn = _plan_dim(M, tn_max, 128)   # output features: lane dim of out
    K_pad, tk = _plan_dim(K, tk_max, 128)   # reduction: lane dim of x and W

    w_p = jnp.pad(weights, ((0, M_pad - M), (0, K_pad - K)))
    b_p = jnp.pad(bias, (0, M_pad - M)).reshape(1, M_pad)
    if use_bf16_mxu:
        # Pre-cast in HBM: halves weight HBM->VMEM bytes (dominant when B << M)
        # and removes the per-step VPU pack ops inside the kernel.
        w_p = w_p.astype(jnp.bfloat16)
    # TODO(synk): int8 (v5e/v6e) / fp8 (v7x) weight quantization with a
    # per-channel dequant scale in the epilogue would quarter weight traffic.
    return {
        "w": w_p, "b": b_p, "M": M, "K": K,
        "M_pad": M_pad, "K_pad": K_pad, "tn": tn, "tk": tk,
        "use_bf16_mxu": use_bf16_mxu,
    }


def memristive_linear(x, weights=None, bias=None, memristive_config=None, *,
                      use_bf16_mxu=False, prepared=None,
                      tm_max=_TM_MAX, tn_max=_TN_MAX, tk_max=_TK_MAX):
    """JAX/Pallas equivalent of MemristiveLinearLayer.forward.

    In the disturbance-free path of the PyTorch module the conductance
    mapping cancels exactly (see module header), so the data path is
    x @ W^T + b; k_V / G_on / G_off only affect results at the level of f32
    rounding.  Note: if all weights and biases are zero the PyTorch reference
    produces NaN/Inf (division by max|W,b| == 0); this implementation
    returns 0.
    """
    memristive_config = memristive_config or {}
    if memristive_config.get("disturb_conductance", False):
        # TODO(synk): stochastic conductance disturbance ('fixed'/'device')
        # needs the explicit pos/neg crossbar form plus the pltpu PRNG; it is
        # not implemented in this deterministic hot path.
        raise NotImplementedError("disturb_conductance not implemented")

    if prepared is None:
        prepared = prepare_memristive_weights(
            weights, bias, use_bf16_mxu=use_bf16_mxu,
            tn_max=tn_max, tk_max=tk_max)

    use_bf16_mxu = prepared["use_bf16_mxu"]
    w_p, b_p = prepared["w"], prepared["b"]
    M, K = prepared["M"], prepared["K"]
    M_pad, K_pad = prepared["M_pad"], prepared["K_pad"]
    tn, tk = prepared["tn"], prepared["tk"]

    x = jnp.asarray(x, jnp.float32)
    B = x.shape[0]
    assert x.shape[1] == K, "input feature dim mismatch"

    # bf16 packs two rows per sublane -> align the batch tile to 16 rows.
    sublane = 16 if use_bf16_mxu else 8
    B_pad, tm = _plan_dim(B, tm_max, sublane)

    x_p = jnp.pad(x, ((0, B_pad - B), (0, K_pad - K)))
    if use_bf16_mxu:
        x_p = x_p.astype(jnp.bfloat16)

    grid_n = M_pad // tn
    grid_m = B_pad // tm
    grid_k = K_pad // tk
    # Output-feature tiles outermost, batch tiles middle, K innermost: when K
    # fits in one tile the (tn, tk) weight block is reused across the batch
    # axis, so the big (M, K) operand is streamed from HBM exactly once and
    # only the small activation tile is re-fetched per output tile.
    grid = (grid_n, grid_m, grid_k)

    if grid_k == 1:
        kernel = _linear_kernel_single_k
        scratch_shapes = []
    else:
        kernel = _linear_kernel_multi_k
        scratch_shapes = [pltpu.VMEM((tm, tn), jnp.float32)]

    op_bytes = 2 if use_bf16_mxu else 4
    out_p = pl.pallas_call(
        kernel,
        out_shape=jax.ShapeDtypeStruct((B_pad, M_pad), jnp.float32),
        grid_spec=pltpu.PrefetchScalarGridSpec(
            num_scalar_prefetch=0,
            grid=grid,
            in_specs=[
                pl.BlockSpec((tm, tk), lambda j, i, k: (i, k)),   # x
                pl.BlockSpec((tn, tk), lambda j, i, k: (j, k)),   # W (raw)
                pl.BlockSpec((1, tn), lambda j, i, k: (0, j)),    # bias row
            ],
            out_specs=pl.BlockSpec((tm, tn), lambda j, i, k: (i, j)),
            scratch_shapes=scratch_shapes,
        ),
        compiler_params=pltpu.CompilerParams(
            dimension_semantics=("parallel", "parallel", "arbitrary"),
            # Sized against v7x's 64 MiB per-TensorCore VMEM; the worst-case
            # double-buffered tile footprint with the caps above is ~19 MiB.
            vmem_limit_bytes=48 * 1024 * 1024,
        ),
        cost_estimate=pl.CostEstimate(
            flops=2 * B_pad * K_pad * M_pad,
            transcendentals=0,
            bytes_accessed=(op_bytes * (B_pad * K_pad + M_pad * K_pad)
                            + 4 * (B_pad * M_pad + M_pad)),
        ),
    )(x_p, w_p, b_p)

    return out_p[:B, :M]


def _reference(x, weights, bias, cfg):
    """Pure-JAX reference mirroring the PyTorch math step-by-step."""
    B = x.shape[0]
    inputs = jnp.concatenate([x, jnp.ones((B, 1), x.dtype)], axis=1)
    wb = jnp.concatenate([weights.T, bias[None, :]], axis=0)
    k_V, G_off, G_on = cfg["k_V"], cfg["G_off"], cfg["G_on"]
    V = k_V * inputs
    max_wb = jnp.max(jnp.abs(wb))
    k_G = (G_on - G_off) / max_wb
    k_I = k_V * k_G
    G_eff = k_G * wb
    G_pos = G_off + jnp.maximum(G_eff, 0.0)
    G_neg = G_off - jnp.minimum(G_eff, 0.0)
    G = jnp.concatenate([G_pos[:, :, None], G_neg[:, :, None]], axis=-1)
    G = G.reshape(G_pos.shape[0], -1)
    I = jnp.sum(V[:, :, None] * G[None, :, :], axis=1)
    I_total = I[:, 0::2] - I[:, 1::2]
    return I_total / k_I


if __name__ == "__main__":
    memristive_config = {
        "ideal": False,
        "disturb_conductance": False,
        "disturb_mode": "fixed",
        "disturbance_probability": 0.1,
        "G_off": 1e-4,
        "G_on": 1e-3,
        "R": 1.0,
        "c": 1.0,
        "d_epsilon": 1.0,
        "k_V": 0.5,
    }

    key = jax.random.PRNGKey(0)

    # --- Case 1: module-default small shapes (single grid step) ------------
    batch, size_in, size_out = 2, 32, 16
    kx, kw = jax.random.split(key)
    stdv = 1.0 / jnp.sqrt(jnp.float32(size_in))
    weights = stdv * jax.random.normal(kw, (size_out, size_in), jnp.float32)
    bias = jnp.zeros((size_out,), jnp.float32)
    x = jax.random.normal(kx, (batch, size_in), jnp.float32)

    y = jax.block_until_ready(
        memristive_linear(x, weights, bias, memristive_config))
    y_ref = _reference(x, weights, bias, memristive_config)
    assert y.shape == (batch, size_out)
    assert jnp.allclose(y, y_ref, rtol=1e-4, atol=1e-5), "f32 mismatch (small)"

    # bf16-MXU fast path with weights pre-padded/pre-cast once at "init".
    prepared_bf16 = prepare_memristive_weights(weights, bias,
                                               use_bf16_mxu=True)
    y_bf16 = jax.block_until_ready(
        memristive_linear(x, memristive_config=memristive_config,
                          prepared=prepared_bf16))
    assert jnp.allclose(y_bf16, y_ref, rtol=5e-2, atol=5e-2), "bf16 mismatch"

    # --- Case 2: non-aligned shapes, bias != 0, still one grid step --------
    batch2, size_in2, size_out2 = 64, 384, 272
    k1, k2, k3 = jax.random.split(key, 3)
    stdv2 = 1.0 / jnp.sqrt(jnp.float32(size_in2))
    weights2 = stdv2 * jax.random.normal(k1, (size_out2, size_in2), jnp.float32)
    bias2 = 0.1 * jax.random.normal(k2, (size_out2,), jnp.float32)
    x2 = jax.random.normal(k3, (batch2, size_in2), jnp.float32)

    y2 = jax.block_until_ready(
        memristive_linear(x2, weights2, bias2, memristive_config))
    y2_ref = _reference(x2, weights2, bias2, memristive_config)
    assert y2.shape == (batch2, size_out2)
    assert jnp.allclose(y2, y2_ref, rtol=1e-4, atol=1e-4), "f32 mismatch (2)"

    # --- Case 3: force a real (N, B, K) tiled grid + accumulator path ------
    y3 = jax.block_until_ready(
        memristive_linear(x2, weights2, bias2, memristive_config,
                          tm_max=32, tn_max=128, tk_max=128))
    assert jnp.allclose(y3, y2_ref, rtol=1e-4, atol=1e-4), "f32 mismatch (3)"

    print("KERNEL_OK")
</pallas_src>

<mosaic_0001>
module attributes {stable_mosaic.version = 11 : i64} {
  func.func @_linear_kernel_single_k(%arg0: i32, %arg1: i32, %arg2: i32, %arg3: memref<8x128xf32, #tpu.memory_space<vmem>>, %arg4: memref<128x128xf32, #tpu.memory_space<vmem>>, %arg5: memref<1x128xf32, #tpu.memory_space<vmem>>, %arg6: memref<8x128xf32, #tpu.memory_space<vmem>>) attributes {dimension_semantics = [#tpu.dimension_semantics<parallel>, #tpu.dimension_semantics<parallel>, #tpu.dimension_semantics<arbitrary>], iteration_bounds = array<i64: 1, 1, 1>, scalar_prefetch = 0 : i64, scratch_operands = 0 : i64, tpu.core_type = #tpu.core_type<tc>, window_params = [{transform_indices = @transform_0, window_bounds = array<i64: 8, 128>}, {transform_indices = @transform_1, window_bounds = array<i64: 128, 128>}, {transform_indices = @transform_2, window_bounds = array<i64: 1, 128>}, {transform_indices = @transform_3, window_bounds = array<i64: 8, 128>}]} {
    %c0 = arith.constant 0 : index
    %c0_0 = arith.constant 0 : index
    %0 = vector.load %arg3[%c0, %c0_0] : memref<8x128xf32, #tpu.memory_space<vmem>>, vector<8x128xf32>
    %c0_1 = arith.constant 0 : index
    %c0_2 = arith.constant 0 : index
    %1 = vector.load %arg4[%c0_1, %c0_2] : memref<128x128xf32, #tpu.memory_space<vmem>>, vector<128x128xf32>
    %cst = arith.constant dense<0.000000e+00> : vector<8x128xf32>
    %2 = tpu.matmul %0, %1, %cst {dimension_numbers = #tpu.dot_dimension_numbers<[1], [1], [0], [0], [0, 0, 1, 0], [], []>} : vector<8x128xf32>, vector<128x128xf32>, vector<8x128xf32> -> vector<8x128xf32>
    %c0_3 = arith.constant 0 : index
    %c0_4 = arith.constant 0 : index
    %3 = vector.load %arg5[%c0_3, %c0_4] : memref<1x128xf32, #tpu.memory_space<vmem>>, vector<1x128xf32>
    %4 = vector.broadcast %3 : vector<1x128xf32> to vector<8x128xf32>
    %5 = arith.addf %2, %4 : vector<8x128xf32>
    %c0_5 = arith.constant 0 : index
    %c0_6 = arith.constant 0 : index
    %6 = vector.load %arg6[%c0_5, %c0_6] : memref<8x128xf32, #tpu.memory_space<vmem>>, vector<8x128xf32>
    tpu.vector_store %arg6[%c0_5, %c0_6], %5 {strides = array<i32>} : memref<8x128xf32, #tpu.memory_space<vmem>>, vector<8x128xf32>,
    return
  }
  func.func @transform_0(%arg0: i32, %arg1: i32, %arg2: i32) -> (i32, i32) {
    %c0_i32 = arith.constant 0 : i32
    return %arg1, %arg2 : i32, i32
  }
  func.func @transform_1(%arg0: i32, %arg1: i32, %arg2: i32) -> (i32, i32) {
    %c0_i32 = arith.constant 0 : i32
    return %arg0, %arg2 : i32, i32
  }
  func.func @transform_2(%arg0: i32, %arg1: i32, %arg2: i32) -> (i32, i32) {
    %c0_i32 = arith.constant 0 : i32
    %c0_i32_0 = arith.constant 0 : i32
    return %c0_i32, %arg0 : i32, i32
  }
  func.func @transform_3(%arg0: i32, %arg1: i32, %arg2: i32) -> (i32, i32) {
    %c0_i32 = arith.constant 0 : i32
    return %arg1, %arg0 : i32, i32
  }
}

</mosaic_0001>

<llo_original>
// kernel: tpu_custom_call.1
$region0: #{tpu_custom_call.1}
  #allocation0 [shape = 'u32[]', space=smem, size = 0x4, offset = 0x4, fixed_abs, tag = 'smem constant byte address 0x4 - core index']
  #allocation1 [shape = 'u32[144,128]{1,0:T(1,128)}', space=vmem, size = 0x12000, scoped, tag = 'internal scratch']
  %s0 = inlined_call_operand.hbm [shape: f32[8,128], index: 0, kind: input, shape index: {}]
  %s1 = inlined_call_operand.hbm [shape: f32[128,128], index: 1, kind: input, shape index: {}]
  %s2 = inlined_call_operand.vmem [shape: f32[1,128], index: 2, kind: input, shape index: {}]
  %s3 = inlined_call_operand.hbm [shape: f32[8,128], index: 3, kind: output, shape index: {}]
  %s4 = sld [smem:[#allocation0]]
  $region30: #{tpu_custom_call.1} parent=0
    _
  %s6 = ssub.s32 1, %s4
  %s7 = scalar_select 0, %s6, %s4
  $region1: #{tpu_custom_call.1} parent=0
    #allocation2 [shape = 'u8[4096]{0}', space=vmem, size = 0x1000, scoped, tag = 'input window, operand 0, single buffered']
    #allocation3 [shape = 's32[1]{0}', space=sflag, size = 0x4, scoped, tag = 'scoped memory for tpu_custom_call.1']
    #allocation4 [shape = 's32[1]{0}', space=sflag, size = 0x4, scoped, tag = 'scoped memory for tpu_custom_call.1']
    #allocation5 [shape = 'u8[65536]{0}', space=vmem, size = 0x10000, scoped, tag = 'input window, operand 1, single buffered']
    #allocation6 [shape = 's32[1]{0}', space=sflag, size = 0x4, scoped, tag = 'scoped memory for tpu_custom_call.1']
    #allocation7 [shape = 'u8[4096]{0}', space=vmem, size = 0x1000, scoped, tag = 'output window, operand 0, single buffered']
    %8 = vsyncpa [#allocation3], 0
    %9 = vsyncpa [#allocation6], 0
    %10 = vsyncpa [#allocation4], 0
    // Predicated region
    $region2: #{tpu_custom_call.1} parent=1 // pred_check
      _
    $region3: #{tpu_custom_call.1} parent=1 // pred_check_branch
      %12 = sbr.rel (0) target = $region5
    $region4: #{tpu_custom_call.1} parent=1 // pred_region
      %s14 = ssub.s32 128, 128
      %15 = vsyncadd [#allocation3], %s14
      %s17 = sshll.u32 [#allocation2], 4
      %s18 = int_to_ptr.vmem [resolvable:$true] %s17
      %20 = dma.hbm_to_vmem [thread:$0]  %s0, 128, %s18, [#allocation3]
    $region5: #{tpu_custom_call.1} parent=1 // pred_fallthru
      _
    // Predicated region
    $region6: #{tpu_custom_call.1} parent=1 // pred_check
      _
    $region7: #{tpu_custom_call.1} parent=1 // pred_check_branch
      %22 = sbr.rel (0) target = $region9
    $region8: #{tpu_custom_call.1} parent=1 // pred_region
      %s24 = ssub.s32 2048, 2048
      %25 = vsyncadd [#allocation6], %s24
      %s26 = sshll.u32 [#allocation5], 4
      %s27 = int_to_ptr.vmem [resolvable:$true] %s26
      %32 = dma.hbm_to_vmem [thread:$0]  %s1, 2048, %s27, [#allocation6], 128, 128, 8
    $region9: #{tpu_custom_call.1} parent=1 // pred_fallthru
      _
    // Predicated region
    $region10: #{tpu_custom_call.1} parent=1 // pred_check
      _
    $region11: #{tpu_custom_call.1} parent=1 // pred_check_branch
      %34 = sbr.rel (0) target = $region13
    $region12: #{tpu_custom_call.1} parent=1 // pred_region
      _
    $region13: #{tpu_custom_call.1} parent=1 // pred_fallthru
      _
    // Predicated region
    $region14: #{tpu_custom_call.1} parent=1 // pred_check
      _
    $region15: #{tpu_custom_call.1} parent=1 // pred_check_branch
      %36 = sbr.rel (0) target = $region17
    $region16: #{tpu_custom_call.1} parent=1 // pred_region
      %37 = dma.done [#allocation3], 128
    $region17: #{tpu_custom_call.1} parent=1 // pred_fallthru
      _
    // Predicated region
    $region18: #{tpu_custom_call.1} parent=1 // pred_check
      _
    $region19: #{tpu_custom_call.1} parent=1 // pred_check_branch
      %39 = sbr.rel (0) target = $region21
    $region20: #{tpu_custom_call.1} parent=1 // pred_region
      %40 = dma.done [#allocation6], 2048
    $region21: #{tpu_custom_call.1} parent=1 // pred_fallthru
      _
    %v41 = vld [vmem:[#allocation2] sm:$0xff]
    %v42 = vld [vmem:[#allocation5] sm:$0xff]
    %v43 = vld [vmem:[#allocation5 + $0x8] sm:$0xff]
    %v44 = vld [vmem:[#allocation5 + $0x10] sm:$0xff]
    %v45 = vld [vmem:[#allocation5 + $0x18] sm:$0xff]
    %v46 = vld [vmem:[#allocation5 + $0x20] sm:$0xff]
    %v47 = vld [vmem:[#allocation5 + $0x28] sm:$0xff]
    %v48 = vld [vmem:[#allocation5 + $0x30] sm:$0xff]
    %v49 = vld [vmem:[#allocation5 + $0x38] sm:$0xff]
    %v50 = vld [vmem:[#allocation5 + $0x40] sm:$0xff]
    %v51 = vld [vmem:[#allocation5 + $0x48] sm:$0xff]
    %v52 = vld [vmem:[#allocation5 + $0x50] sm:$0xff]
    %v53 = vld [vmem:[#allocation5 + $0x58] sm:$0xff]
    %v54 = vld [vmem:[#allocation5 + $0x60] sm:$0xff]
    %v55 = vld [vmem:[#allocation5 + $0x68] sm:$0xff]
    %v56 = vld [vmem:[#allocation5 + $0x70] sm:$0xff]
    %v57 = vld [vmem:[#allocation5 + $0x78] sm:$0xff]
    %v58 = vld [vmem:[%s2] sm:$0x1]
    %v60 = vlaneseq
    %v61 = vshrl.u32 %v60, 7
    %v62 = vsub.s32 0, %v61
    %v63 = vrot.slane %v58, %v62
    %65 = vmatprep.subr.mxu0 0.0
    %66 = vmatpush1.xpose.msra.mxu0 %v42
    %67 = vmatprep.subr.mxu0 0.0
    %68 = vmatpush1.xpose.msra.mxu0 %v43
    %69 = vmatprep.subr.mxu0 0.0
    %70 = vmatpush1.xpose.msra.mxu0 %v44
    %71 = vmatprep.subr.mxu0 0.0
    %72 = vmatpush1.xpose.msra.mxu0 %v45
    %73 = vmatprep.subr.mxu0 0.0
    %74 = vmatpush1.xpose.msra.mxu0 %v46
    %75 = vmatprep.subr.mxu0 0.0
    %76 = vmatpush1.xpose.msra.mxu0 %v47
    %77 = vmatprep.subr.mxu0 0.0
    %78 = vmatpush1.xpose.msra.mxu0 %v48
    %79 = vmatprep.subr.mxu0 0.0
    %80 = vmatpush1.xpose.msra.mxu0 %v49
    %81 = vmatprep.subr.mxu0 0.0
    %82 = vmatpush1.xpose.msra.mxu0 %v50
    %83 = vmatprep.subr.mxu0 0.0
    %84 = vmatpush1.xpose.msra.mxu0 %v51
    %85 = vmatprep.subr.mxu0 0.0
    %86 = vmatpush1.xpose.msra.mxu0 %v52
    %87 = vmatprep.subr.mxu0 0.0
    %88 = vmatpush1.xpose.msra.mxu0 %v53
    %89 = vmatprep.subr.mxu0 0.0
    %90 = vmatpush1.xpose.msra.mxu0 %v54
    %91 = vmatprep.subr.mxu0 0.0
    %92 = vmatpush1.xpose.msra.mxu0 %v55
    %93 = vmatprep.subr.mxu0 0.0
    %94 = vmatpush1.xpose.msra.mxu0 %v56
    %95 = vmatprep.subr.mxu0 0.0
    %96 = vmatpush1.xpose.msra.mxu0 %v57
    %97 = vmatprep.subr.mxu0 0.0
    %98 = vmatpush1.xpose.msra.mxu0 0.0
    %99 = vmatprep.subr.mxu0 0.0
    %100 = vmatpush1.xpose.msra.mxu0 0.0
    %101 = vmatprep.subr.mxu0 0.0
    %102 = vmatpush1.xpose.msra.mxu0 0.0
    %103 = vmatprep.subr.mxu0 0.0
    %104 = vmatpush1.xpose.msra.mxu0 0.0
    %105 = vmatprep.subr.mxu0 0.0
    %106 = vmatpush1.xpose.msra.mxu0 0.0
    %107 = vmatprep.subr.mxu0 0.0
    %108 = vmatpush1.xpose.msra.mxu0 0.0
    %109 = vmatprep.subr.mxu0 0.0
    %110 = vmatpush1.xpose.msra.mxu0 0.0
    %111 = vmatprep.subr.mxu0 0.0
    %112 = vmatpush1.xpose.msra.mxu0 0.0
    %113 = vmatprep.subr.mxu0 0.0
    %114 = vmatpush1.xpose.msra.mxu0 0.0
    %115 = vmatprep.subr.mxu0 0.0
    %116 = vmatpush1.xpose.msra.mxu0 0.0
    %117 = vmatprep.subr.mxu0 0.0
    %118 = vmatpush1.xpose.msra.mxu0 0.0
    %119 = vmatprep.subr.mxu0 0.0
    %120 = vmatpush1.xpose.msra.mxu0 0.0
    %121 = vmatprep.subr.mxu0 0.0
    %122 = vmatpush1.xpose.msra.mxu0 0.0
    %123 = vmatprep.subr.mxu0 0.0
    %124 = vmatpush1.xpose.msra.mxu0 0.0
    %125 = vmatprep.subr.mxu0 0.0
    %126 = vmatpush1.xpose.msra.mxu0 0.0
    %127 = vmatprep.subr.mxu0 0.0
    %128 = vmatpush1.xpose.msra.mxu0 0.0
    %129 = vmatprep.mubr.f32.mxu0 0.0
    %130 = vmatmul.mubr.f32.gmra.mrb[0].mxu0 %v41
    %v131 = vpop.f32.mrb[0].mxu0
    %v132 = vadd.f32 %v63, %v131
    %v133 = vpop.f32.mrb[0].mxu0
    %134 = vdwg.mxu0
    %135 = vst [vmem:[#allocation7] sm:$0xff] %v132
    // Predicated region
    $region22: #{tpu_custom_call.1} parent=1 // pred_check
      _
    $region23: #{tpu_custom_call.1} parent=1 // pred_check_branch
      %137 = sbr.rel (0) target = $region25
    $region24: #{tpu_custom_call.1} parent=1 // pred_region
      %s139 = ssub.s32 128, 128
      %140 = vsyncadd [#allocation4], %s139
      %s142 = sshll.u32 [#allocation7], 4
      %s143 = int_to_ptr.vmem [resolvable:$true] %s142
      %145 = dma.vmem_to_hbm [thread:$0]  %s143, 128, %s3, [#allocation4]
    $region25: #{tpu_custom_call.1} parent=1 // pred_fallthru
      _
    // Predicated region
    $region26: #{tpu_custom_call.1} parent=1 // pred_check
      _
    $region27: #{tpu_custom_call.1} parent=1 // pred_check_branch
      %147 = sbr.rel (0) target = $region29
    $region28: #{tpu_custom_call.1} parent=1 // pred_region
      %148 = dma.done [#allocation4], 128
    $region29: #{tpu_custom_call.1} parent=1 // pred_fallthru
      _
    %149 = vsyncpa [#allocation3], 1
    %150 = vsyncpa [#allocation6], 1
    %151 = vsyncpa [#allocation4], 1

</llo_original>
